<compile_context>
chip_gen: v5e
topology: v5e:2x2
jax: 0.10.0
libtpu: 0.0.40
codegen_flags: <defaults>
</compile_context>

<pallas_src>
import numpy as np

import jax
import jax.numpy as jnp
from jax import lax
from jax.experimental import pallas as pl
from jax.experimental.pallas import tpu as pltpu


def _residual_conv3x3_kernel(x_ref, m_ref, b_ref, o_ref, xpad_ref):
    """o = conv3x3_same(x, w) + b + x on the lane-dense (H, L) slab.

    x_ref:    (H, L)      activation slab; L = N*W*C (=128 here -> full lanes)
    m_ref:    (3, L, L)   banded block-diagonal weights, one matrix per dy
    b_ref:    (1, L)      bias tiled across batch and width
    o_ref:    (H, L)      output slab
    xpad_ref: (H+2, L)    VMEM scratch: x with one zero halo row above/below
    """
    H, L = x_ref.shape

    # Zero only the 2 halo rows; the interior is fully overwritten below.
    xpad_ref[0:1, :] = jnp.zeros((1, L), xpad_ref.dtype)
    xpad_ref[H + 1:H + 2, :] = jnp.zeros((1, L), xpad_ref.dtype)
    xpad_ref[1:H + 1, :] = x_ref[...]

    # Accumulator starts as the broadcast bias (saves one full-slab VPU add).
    acc = jnp.broadcast_to(b_ref[...].astype(jnp.float32), (H, L))

    # 3x3 conv as three lane-dense MXU matmuls: the W-shift and the channel
    # contraction live inside m_ref[dy]; the H-shift is a 1-row window into the
    # padded scratch (2 vregs per tap, no reshape, f32 accumulation).
    for dy in range(3):
        acc = acc + jnp.dot(xpad_ref[dy:dy + H, :], m_ref[dy],
                            preferred_element_type=jnp.float32)

    # Residual straight from the resident x block (no second HBM stream, no
    # misaligned re-read of the scratch), added in f32.
    o_ref[...] = (acc + x_ref[...].astype(jnp.float32)).astype(o_ref.dtype)


def prepare_residual_conv3x3(w_oihw, b, *, n_batch, width):
    """One-time host-side parameter preprocessing.

    Builds, for each kernel row dy, a banded block-diagonal matrix M_dy of
    shape (L, L), L = n_batch*width*C, such that for the lane-dense slab
    X[h, n*W*C + w*C + ci] = x[n, ci, h, w] the 'same' 3x3 convolution is
        conv[h] = sum_dy Xpad[h + dy] @ M_dy
    (Xpad = X with one zero row above and below).  Out-of-range W taps are
    simply absent from the band, which implements the zero padding in W.
    """
    w_oihw = np.asarray(w_oihw, dtype=np.float32)
    b = np.asarray(b, dtype=np.float32)
    cout, cin, kh, kw = w_oihw.shape
    assert (kh, kw) == (3, 3) and cout == cin, "expects a CxC 3x3 'same' conv"
    c = cin
    wc = width * c
    l = n_batch * wc
    w_hwio = np.transpose(w_oihw, (2, 3, 1, 0))           # (3, 3, Cin, Cout)

    m = np.zeros((3, l, l), dtype=np.float32)
    for dy in range(3):
        for dx in range(3):
            for w_out in range(width):
                w_in = w_out + dx - 1
                if not 0 <= w_in < width:
                    continue                               # zero padding in W
                for n in range(n_batch):                   # block-diag per image
                    off = n * wc
                    m[dy,
                      off + w_in * c: off + (w_in + 1) * c,
                      off + w_out * c: off + (w_out + 1) * c] = w_hwio[dy, dx]

    b_row = np.tile(b, n_batch * width).reshape(1, l)      # bias per lane
    return jnp.asarray(m), jnp.asarray(b_row)


@jax.jit
def residual_conv3x3(x_nchw, m_banded, b_row):
    """Residual(Conv2d(C, C, 3, padding=1))(x) for NCHW x (PyTorch layout)."""
    n, c, h, w = x_nchw.shape
    l = n * w * c
    assert m_banded.shape == (3, l, l) and b_row.shape == (1, l)

    # Lane-dense layout plumbing: present the whole batch as one (H, N*W*C)
    # slab (wrapper-side transpose/reshape of ~8 KiB, outside the kernel).
    x_slab = jnp.transpose(x_nchw, (2, 0, 3, 1)).reshape(h, l)

    out_slab = pl.pallas_call(
        _residual_conv3x3_kernel,
        out_shape=jax.ShapeDtypeStruct((h, l), x_nchw.dtype),
        grid_spec=pltpu.PrefetchScalarGridSpec(
            num_scalar_prefetch=0,
            grid=(1,),                                     # whole batch, 1 step
            in_specs=[
                pl.BlockSpec((h, l), lambda i: (0, 0)),           # x slab
                pl.BlockSpec((3, l, l), lambda i: (0, 0, 0)),     # banded weights
                pl.BlockSpec((1, l), lambda i: (0, 0)),           # bias row
            ],
            out_specs=pl.BlockSpec((h, l), lambda i: (0, 0)),
            scratch_shapes=[pltpu.VMEM((h + 2, l), x_nchw.dtype)],
        ),
        compiler_params=pltpu.CompilerParams(
            dimension_semantics=("arbitrary",)),
    )(x_slab, m_banded, b_row)

    # Back to the module's NCHW layout.
    return jnp.transpose(out_slab.reshape(h, n, w, c), (1, 3, 0, 2))


def _reference(x_nchw, w_oihw, b):
    """Pure-JAX reference: conv2d(3x3, pad=1) + bias + x, NCHW/OIHW."""
    y = lax.conv_general_dilated(
        x_nchw, w_oihw, window_strides=(1, 1), padding=((1, 1), (1, 1)),
        dimension_numbers=("NCHW", "OIHW", "NCHW"))
    return y + b.reshape(1, -1, 1, 1) + x_nchw


if __name__ == "__main__":
    # Small deterministic shapes matching the PyTorch module (NCHW).
    N, C, H, W = 2, 4, 16, 16
    key = jax.random.PRNGKey(0)
    kx, kw, kb = jax.random.split(key, 3)

    x = jax.random.normal(kx, (N, C, H, W), dtype=jnp.float32)

    # Deterministic Conv2d(C, C, 3) parameter init (PyTorch-style uniform bound).
    fan_in = C * 3 * 3
    bound = 1.0 / (fan_in ** 0.5)
    w_oihw = jax.random.uniform(kw, (C, C, 3, 3), jnp.float32, -bound, bound)
    b = jax.random.uniform(kb, (C,), jnp.float32, -bound, bound)

    m_banded, b_row = prepare_residual_conv3x3(w_oihw, b, n_batch=N, width=W)
    out = jax.block_until_ready(residual_conv3x3(x, m_banded, b_row))

    ref = _reference(x, w_oihw, b)
    assert out.shape == (N, C, H, W)
    assert jnp.allclose(out, ref, atol=1e-4, rtol=1e-4), "mismatch vs reference"

    print("KERNEL_OK")
</pallas_src>

<mosaic_0001>
module attributes {stable_mosaic.version = 11 : i64} {
  func.func @_residual_conv3x3_kernel(%arg0: i32, %arg1: memref<16x128xf32, #tpu.memory_space<vmem>>, %arg2: memref<3x128x128xf32, #tpu.memory_space<vmem>>, %arg3: memref<1x128xf32, #tpu.memory_space<vmem>>, %arg4: memref<16x128xf32, #tpu.memory_space<vmem>>, %arg5: memref<18x128xf32, #tpu.memory_space<vmem>>) attributes {dimension_semantics = [#tpu.dimension_semantics<arbitrary>], iteration_bounds = array<i64: 1>, scalar_prefetch = 0 : i64, scratch_operands = 1 : i64, tpu.core_type = #tpu.core_type<tc>, window_params = [{pipeline_mode = #tpu.pipeline_mode<synchronous>, transform_indices = @transform_0, window_bounds = array<i64: 16, 128>}, {pipeline_mode = #tpu.pipeline_mode<synchronous>, transform_indices = @transform_1, window_bounds = array<i64: 3, 128, 128>}, {pipeline_mode = #tpu.pipeline_mode<synchronous>, transform_indices = @transform_2, window_bounds = array<i64: 1, 128>}, {pipeline_mode = #tpu.pipeline_mode<synchronous>, transform_indices = @transform_3, window_bounds = array<i64: 16, 128>}]} {
    %cst = arith.constant 0.000000e+00 : f32
    %0 = vector.broadcast %cst : f32 to vector<1x128xf32>
    %c0 = arith.constant 0 : index
    %c0_0 = arith.constant 0 : index
    %1 = vector.load %arg5[%c0, %c0_0] : memref<18x128xf32, #tpu.memory_space<vmem>>, vector<1x128xf32>
    tpu.vector_store %arg5[%c0, %c0_0], %0 {strides = array<i32>} : memref<18x128xf32, #tpu.memory_space<vmem>>, vector<1x128xf32>,
    %cst_1 = arith.constant 0.000000e+00 : f32
    %2 = vector.broadcast %cst_1 : f32 to vector<1x128xf32>
    %c17 = arith.constant 17 : index
    %c0_2 = arith.constant 0 : index
    %3 = vector.load %arg5[%c17, %c0_2] : memref<18x128xf32, #tpu.memory_space<vmem>>, vector<1x128xf32>
    tpu.vector_store %arg5[%c17, %c0_2], %2 {strides = array<i32>} : memref<18x128xf32, #tpu.memory_space<vmem>>, vector<1x128xf32>,
    %c0_3 = arith.constant 0 : index
    %c0_4 = arith.constant 0 : index
    %4 = vector.load %arg1[%c0_3, %c0_4] : memref<16x128xf32, #tpu.memory_space<vmem>>, vector<16x128xf32>
    %c1 = arith.constant 1 : index
    %c0_5 = arith.constant 0 : index
    %5 = vector.load %arg5[%c1, %c0_5] : memref<18x128xf32, #tpu.memory_space<vmem>>, vector<16x128xf32>
    tpu.vector_store %arg5[%c1, %c0_5], %4 {strides = array<i32>} : memref<18x128xf32, #tpu.memory_space<vmem>>, vector<16x128xf32>,
    %c0_6 = arith.constant 0 : index
    %c0_7 = arith.constant 0 : index
    %6 = vector.load %arg3[%c0_6, %c0_7] : memref<1x128xf32, #tpu.memory_space<vmem>>, vector<1x128xf32>
    %7 = vector.shape_cast %6 : vector<1x128xf32> to vector<1x128xf32>
    %8 = vector.broadcast %7 : vector<1x128xf32> to vector<16x128xf32>
    %c0_8 = arith.constant 0 : index
    %c0_9 = arith.constant 0 : index
    %9 = vector.load %arg5[%c0_8, %c0_9] : memref<18x128xf32, #tpu.memory_space<vmem>>, vector<16x128xf32>
    %c0_10 = arith.constant 0 : index
    %c0_11 = arith.constant 0 : index
    %c0_12 = arith.constant 0 : index
    %10 = vector.load %arg2[%c0_10, %c0_11, %c0_12] : memref<3x128x128xf32, #tpu.memory_space<vmem>>, vector<1x128x128xf32>
    %11 = vector.shape_cast %10 : vector<1x128x128xf32> to vector<128x128xf32>
    %cst_13 = arith.constant dense<0.000000e+00> : vector<16x128xf32>
    %12 = tpu.matmul %9, %11, %cst_13 {dimension_numbers = #tpu.dot_dimension_numbers<[1], [0], [0], [1], [0, 0, 1, 1], [], []>} : vector<16x128xf32>, vector<128x128xf32>, vector<16x128xf32> -> vector<16x128xf32>
    %13 = arith.addf %8, %12 : vector<16x128xf32>
    %c1_14 = arith.constant 1 : index
    %c0_15 = arith.constant 0 : index
    %14 = vector.load %arg5[%c1_14, %c0_15] : memref<18x128xf32, #tpu.memory_space<vmem>>, vector<16x128xf32>
    %c1_16 = arith.constant 1 : index
    %c0_17 = arith.constant 0 : index
    %c0_18 = arith.constant 0 : index
    %15 = vector.load %arg2[%c1_16, %c0_17, %c0_18] : memref<3x128x128xf32, #tpu.memory_space<vmem>>, vector<1x128x128xf32>
    %16 = vector.shape_cast %15 : vector<1x128x128xf32> to vector<128x128xf32>
    %cst_19 = arith.constant dense<0.000000e+00> : vector<16x128xf32>
    %17 = tpu.matmul %14, %16, %cst_19 {dimension_numbers = #tpu.dot_dimension_numbers<[1], [0], [0], [1], [0, 0, 1, 1], [], []>} : vector<16x128xf32>, vector<128x128xf32>, vector<16x128xf32> -> vector<16x128xf32>
    %18 = arith.addf %13, %17 : vector<16x128xf32>
    %c2 = arith.constant 2 : index
    %c0_20 = arith.constant 0 : index
    %19 = vector.load %arg5[%c2, %c0_20] : memref<18x128xf32, #tpu.memory_space<vmem>>, vector<16x128xf32>
    %c2_21 = arith.constant 2 : index
    %c0_22 = arith.constant 0 : index
    %c0_23 = arith.constant 0 : index
    %20 = vector.load %arg2[%c2_21, %c0_22, %c0_23] : memref<3x128x128xf32, #tpu.memory_space<vmem>>, vector<1x128x128xf32>
    %21 = vector.shape_cast %20 : vector<1x128x128xf32> to vector<128x128xf32>
    %cst_24 = arith.constant dense<0.000000e+00> : vector<16x128xf32>
    %22 = tpu.matmul %19, %21, %cst_24 {dimension_numbers = #tpu.dot_dimension_numbers<[1], [0], [0], [1], [0, 0, 1, 1], [], []>} : vector<16x128xf32>, vector<128x128xf32>, vector<16x128xf32> -> vector<16x128xf32>
    %23 = arith.addf %18, %22 : vector<16x128xf32>
    %c0_25 = arith.constant 0 : index
    %c0_26 = arith.constant 0 : index
    %24 = vector.load %arg1[%c0_25, %c0_26] : memref<16x128xf32, #tpu.memory_space<vmem>>, vector<16x128xf32>
    %25 = arith.addf %23, %24 : vector<16x128xf32>
    %c0_27 = arith.constant 0 : index
    %c0_28 = arith.constant 0 : index
    %26 = vector.load %arg4[%c0_27, %c0_28] : memref<16x128xf32, #tpu.memory_space<vmem>>, vector<16x128xf32>
    tpu.vector_store %arg4[%c0_27, %c0_28], %25 {strides = array<i32>} : memref<16x128xf32, #tpu.memory_space<vmem>>, vector<16x128xf32>,
    return
  }
  func.func @transform_0(%arg0: i32) -> (i32, i32) {
    %c0_i32 = arith.constant 0 : i32
    %c0_i32_0 = arith.constant 0 : i32
    %c0_i32_1 = arith.constant 0 : i32
    return %c0_i32, %c0_i32_0 : i32, i32
  }
  func.func @transform_1(%arg0: i32) -> (i32, i32, i32) {
    %c0_i32 = arith.constant 0 : i32
    %c0_i32_0 = arith.constant 0 : i32
    %c0_i32_1 = arith.constant 0 : i32
    %c0_i32_2 = arith.constant 0 : i32
    return %c0_i32, %c0_i32_0, %c0_i32_1 : i32, i32, i32
  }
  func.func @transform_2(%arg0: i32) -> (i32, i32) {
    %c0_i32 = arith.constant 0 : i32
    %c0_i32_0 = arith.constant 0 : i32
    %c0_i32_1 = arith.constant 0 : i32
    return %c0_i32, %c0_i32_0 : i32, i32
  }
  func.func @transform_3(%arg0: i32) -> (i32, i32) {
    %c0_i32 = arith.constant 0 : i32
    %c0_i32_0 = arith.constant 0 : i32
    %c0_i32_1 = arith.constant 0 : i32
    return %c0_i32, %c0_i32_0 : i32, i32
  }
}

</mosaic_0001>

<llo_original>
// kernel: residual_conv3x3.1
$region0: #{residual_conv3x3.1}
  #allocation0 [shape = 'u32[]', space=smem, size = 0x4, offset = 0x4, fixed_abs, tag = 'smem constant byte address 0x4 - core index']
  #allocation1 [shape = 'u32[72,128]{1,0:T(1,128)}', space=vmem, size = 0x9000, scoped, tag = 'internal scratch']
  #allocation2 [shape = 'f32[18,128]{1,0:T(8,128)}', space=vmem, size = 0x3000, scoped, tag = 'scratch operand']
  %s0 = inlined_call_operand.vmem [shape: f32[16,128], index: 0, kind: input, shape index: {}]
  %s1 = inlined_call_operand.vmem [shape: f32[3,128,128], index: 1, kind: input, shape index: {}]
  %s2 = inlined_call_operand.vmem [shape: f32[1,128], index: 2, kind: input, shape index: {}]
  %s3 = inlined_call_operand.vmem [shape: f32[16,128], index: 3, kind: output, shape index: {}]
  %s4 = sld [smem:[#allocation0]]
  $region22: #{residual_conv3x3.1} parent=0
    _
  %s6 = ssub.s32 1, %s4
  %s7 = scalar_select 0, %s6, %s4
  // Predicated region
  $region2: #{residual_conv3x3.1} parent=0 // pred_check
    _
  $region3: #{residual_conv3x3.1} parent=0 // pred_check_branch
    %9 = sbr.rel (0) target = $region5
  $region4: #{residual_conv3x3.1} parent=0 // pred_region
    _
  $region5: #{residual_conv3x3.1} parent=0 // pred_fallthru
    _
  // Predicated region
  $region6: #{residual_conv3x3.1} parent=0 // pred_check
    _
  $region7: #{residual_conv3x3.1} parent=0 // pred_check_branch
    %11 = sbr.rel (0) target = $region9
  $region8: #{residual_conv3x3.1} parent=0 // pred_region
    _
  $region9: #{residual_conv3x3.1} parent=0 // pred_fallthru
    _
  // Predicated region
  $region10: #{residual_conv3x3.1} parent=0 // pred_check
    _
  $region11: #{residual_conv3x3.1} parent=0 // pred_check_branch
    %13 = sbr.rel (0) target = $region13
  $region12: #{residual_conv3x3.1} parent=0 // pred_region
    _
  $region13: #{residual_conv3x3.1} parent=0 // pred_fallthru
    _
  %14 = vst [vmem:[#allocation2] sm:$0x1] 0.0
  %15 = vst [vmem:[#allocation2 + $0x11] sm:$0x1] 0.0
  %v16 = vld [vmem:[%s0] sm:$0xff]
  %v17 = vld [vmem:[%s0 + $0x8] sm:$0xff]
  %18 = vst [vmem:[#allocation2 + $0x1] sm:$0xff] %v16
  %19 = vst [vmem:[#allocation2 + $0x9] sm:$0xff] %v17
  %v20 = vld [vmem:[%s2] sm:$0x1]
  %v22 = vperm.slane %v20, 0
  %v24 = vld [vmem:[#allocation2] sm:$0xff]
  %v25 = vld [vmem:[#allocation2 + $0x8] sm:$0xff]
  %v26 = vld [vmem:[%s1] sm:$0xff]
  %v27 = vld [vmem:[%s1 + $0x8] sm:$0xff]
  %v28 = vld [vmem:[%s1 + $0x10] sm:$0xff]
  %v29 = vld [vmem:[%s1 + $0x18] sm:$0xff]
  %v30 = vld [vmem:[%s1 + $0x20] sm:$0xff]
  %v31 = vld [vmem:[%s1 + $0x28] sm:$0xff]
  %v32 = vld [vmem:[%s1 + $0x30] sm:$0xff]
  %v33 = vld [vmem:[%s1 + $0x38] sm:$0xff]
  %v34 = vld [vmem:[%s1 + $0x40] sm:$0xff]
  %v35 = vld [vmem:[%s1 + $0x48] sm:$0xff]
  %v36 = vld [vmem:[%s1 + $0x50] sm:$0xff]
  %v37 = vld [vmem:[%s1 + $0x58] sm:$0xff]
  %v38 = vld [vmem:[%s1 + $0x60] sm:$0xff]
  %v39 = vld [vmem:[%s1 + $0x68] sm:$0xff]
  %v40 = vld [vmem:[%s1 + $0x70] sm:$0xff]
  %v41 = vld [vmem:[%s1 + $0x78] sm:$0xff]
  %42 = vmatpush.msra.mxu0 %v41
  %43 = vmatpush.msra.mxu0 %v40
  %44 = vmatpush.msra.mxu0 %v39
  %45 = vmatpush.msra.mxu0 %v38
  %46 = vmatpush.msra.mxu0 %v37
  %47 = vmatpush.msra.mxu0 %v36
  %48 = vmatpush.msra.mxu0 %v35
  %49 = vmatpush.msra.mxu0 %v34
  %50 = vmatpush.msra.mxu0 %v33
  %51 = vmatpush.msra.mxu0 %v32
  %52 = vmatpush.msra.mxu0 %v31
  %53 = vmatpush.msra.mxu0 %v30
  %54 = vmatpush.msra.mxu0 %v29
  %55 = vmatpush.msra.mxu0 %v28
  %56 = vmatpush.msra.mxu0 %v27
  %57 = vmatpush.msra.mxu0 %v26
  %58 = vmatmul.f32.gmra.mxu0 %v24
  %v59 = vpop.f32.mrf.mxu0
  %v60 = vadd.f32 0.0, %v59
  %61 = vmatmul.f32.gmra.mxu0 %v25
  %v62 = vpop.f32.mrf.mxu0
  %v63 = vadd.f32 0.0, %v62
  %64 = vdwg.mxu0
  %v65 = vadd.f32 %v22, %v60
  %v66 = vadd.f32 %v22, %v63
  %v67 = vld [vmem:[#allocation2 + $0x1] sm:$0xff]
  %v68 = vld [vmem:[#allocation2 + $0x9] sm:$0xff]
  %s69 = scalar_lea.vmem %s1, 128
  %v70 = vld [vmem:[%s69] sm:$0xff]
  %v71 = vld [vmem:[%s69 + $0x8] sm:$0xff]
  %v72 = vld [vmem:[%s69 + $0x10] sm:$0xff]
  %v73 = vld [vmem:[%s69 + $0x18] sm:$0xff]
  %v74 = vld [vmem:[%s69 + $0x20] sm:$0xff]
  %v75 = vld [vmem:[%s69 + $0x28] sm:$0xff]
  %v76 = vld [vmem:[%s69 + $0x30] sm:$0xff]
  %v77 = vld [vmem:[%s69 + $0x38] sm:$0xff]
  %v78 = vld [vmem:[%s69 + $0x40] sm:$0xff]
  %v79 = vld [vmem:[%s69 + $0x48] sm:$0xff]
  %v80 = vld [vmem:[%s69 + $0x50] sm:$0xff]
  %v81 = vld [vmem:[%s69 + $0x58] sm:$0xff]
  %v82 = vld [vmem:[%s69 + $0x60] sm:$0xff]
  %v83 = vld [vmem:[%s69 + $0x68] sm:$0xff]
  %v84 = vld [vmem:[%s69 + $0x70] sm:$0xff]
  %v85 = vld [vmem:[%s69 + $0x78] sm:$0xff]
  %86 = vmatpush.msra.mxu0 %v85
  %87 = vmatpush.msra.mxu0 %v84
  %88 = vmatpush.msra.mxu0 %v83
  %89 = vmatpush.msra.mxu0 %v82
  %90 = vmatpush.msra.mxu0 %v81
  %91 = vmatpush.msra.mxu0 %v80
  %92 = vmatpush.msra.mxu0 %v79
  %93 = vmatpush.msra.mxu0 %v78
  %94 = vmatpush.msra.mxu0 %v77
  %95 = vmatpush.msra.mxu0 %v76
  %96 = vmatpush.msra.mxu0 %v75
  %97 = vmatpush.msra.mxu0 %v74
  %98 = vmatpush.msra.mxu0 %v73
  %99 = vmatpush.msra.mxu0 %v72
  %100 = vmatpush.msra.mxu0 %v71
  %101 = vmatpush.msra.mxu0 %v70
  %102 = vmatmul.f32.gmra.mxu0 %v67
  %v103 = vpop.f32.mrf.mxu0
  %v104 = vadd.f32 0.0, %v103
  %105 = vmatmul.f32.gmra.mxu0 %v68
  %v106 = vpop.f32.mrf.mxu0
  %v107 = vadd.f32 0.0, %v106
  %108 = vdwg.mxu0
  %v109 = vadd.f32 %v65, %v104
  %v110 = vadd.f32 %v66, %v107
  %v111 = vld [vmem:[#allocation2 + $0x2] sm:$0xff]
  %v112 = vld [vmem:[#allocation2 + $0xa] sm:$0xff]
  %s113 = scalar_lea.vmem %s1, 256
  %v114 = vld [vmem:[%s113] sm:$0xff]
  %v115 = vld [vmem:[%s113 + $0x8] sm:$0xff]
  %v116 = vld [vmem:[%s113 + $0x10] sm:$0xff]
  %v117 = vld [vmem:[%s113 + $0x18] sm:$0xff]
  %v118 = vld [vmem:[%s113 + $0x20] sm:$0xff]
  %v119 = vld [vmem:[%s113 + $0x28] sm:$0xff]
  %v120 = vld [vmem:[%s113 + $0x30] sm:$0xff]
  %v121 = vld [vmem:[%s113 + $0x38] sm:$0xff]
  %v122 = vld [vmem:[%s113 + $0x40] sm:$0xff]
  %v123 = vld [vmem:[%s113 + $0x48] sm:$0xff]
  %v124 = vld [vmem:[%s113 + $0x50] sm:$0xff]
  %v125 = vld [vmem:[%s113 + $0x58] sm:$0xff]
  %v126 = vld [vmem:[%s113 + $0x60] sm:$0xff]
  %v127 = vld [vmem:[%s113 + $0x68] sm:$0xff]
  %v128 = vld [vmem:[%s113 + $0x70] sm:$0xff]
  %v129 = vld [vmem:[%s113 + $0x78] sm:$0xff]
  %130 = vmatpush.msra.mxu0 %v129
  %131 = vmatpush.msra.mxu0 %v128
  %132 = vmatpush.msra.mxu0 %v127
  %133 = vmatpush.msra.mxu0 %v126
  %134 = vmatpush.msra.mxu0 %v125
  %135 = vmatpush.msra.mxu0 %v124
  %136 = vmatpush.msra.mxu0 %v123
  %137 = vmatpush.msra.mxu0 %v122
  %138 = vmatpush.msra.mxu0 %v121
  %139 = vmatpush.msra.mxu0 %v120
  %140 = vmatpush.msra.mxu0 %v119
  %141 = vmatpush.msra.mxu0 %v118
  %142 = vmatpush.msra.mxu0 %v117
  %143 = vmatpush.msra.mxu0 %v116
  %144 = vmatpush.msra.mxu0 %v115
  %145 = vmatpush.msra.mxu0 %v114
  %146 = vmatmul.f32.gmra.mxu0 %v111
  %v147 = vpop.f32.mrf.mxu0
  %v148 = vadd.f32 0.0, %v147
  %149 = vmatmul.f32.gmra.mxu0 %v112
  %v150 = vpop.f32.mrf.mxu0
  %v151 = vadd.f32 0.0, %v150
  %152 = vdwg.mxu0
  %v153 = vadd.f32 %v109, %v148
  %v154 = vadd.f32 %v110, %v151
  %v155 = vld [vmem:[%s0] sm:$0xff]
  %v156 = vld [vmem:[%s0 + $0x8] sm:$0xff]
  %v157 = vadd.f32 %v153, %v155
  %v158 = vadd.f32 %v154, %v156
  %159 = vst [vmem:[%s3] sm:$0xff] %v157
  %160 = vst [vmem:[%s3 + $0x8] sm:$0xff] %v158
  // Predicated region
  $region14: #{residual_conv3x3.1} parent=0 // pred_check
    _
  $region15: #{residual_conv3x3.1} parent=0 // pred_check_branch
    %162 = sbr.rel (0) target = $region17
  $region16: #{residual_conv3x3.1} parent=0 // pred_region
    _
  $region17: #{residual_conv3x3.1} parent=0 // pred_fallthru
    _
  // Predicated region
  $region18: #{residual_conv3x3.1} parent=0 // pred_check
    _
  $region19: #{residual_conv3x3.1} parent=0 // pred_check_branch
    %164 = sbr.rel (0) target = $region21
  $region20: #{residual_conv3x3.1} parent=0 // pred_region
    _
  $region21: #{residual_conv3x3.1} parent=0 // pred_fallthru
    _

</llo_original>
